<compile_context>
chip_gen: v5e
topology: v5e:2x2
jax: 0.10.0
libtpu: 0.0.40
codegen_flags: <defaults>
</compile_context>

<pallas_src>
import jax
import jax.numpy as jnp
from jax.experimental import pallas as pl
from jax.experimental.pallas import tpu as pltpu


def _round_up(x, m):
    return ((x + m - 1) // m) * m


def _idh_kernel(lat_ref, nxt_ref,
                w1_ref, b1_ref,
                w2_ref, b2_ref,
                w3_ref, b3_ref,
                o_ref):
    """Fused MLP + tanh on one (TB, ...) batch tile; weights stay VMEM-resident."""
    # Layer 1: in-kernel lane concat (XLU slot, never hits HBM) -> single K=2L dot.
    x = jnp.concatenate([lat_ref[...], nxt_ref[...]], axis=-1)
    h1 = jnp.dot(x, w1_ref[...], preferred_element_type=jnp.float32) + b1_ref[...]
    h1 = jnp.maximum(h1, 0.0)

    # Layer 2 (cast back to the matmul compute dtype; no-op in f32 mode).
    h2 = (jnp.dot(h1.astype(w2_ref.dtype), w2_ref[...],
                  preferred_element_type=jnp.float32) + b2_ref[...])
    h2 = jnp.maximum(h2, 0.0)

    # Layer 3 + tanh, stored at the natural (unpadded) output width.
    mu = (jnp.dot(h2.astype(w3_ref.dtype), w3_ref[...],
                  preferred_element_type=jnp.float32) + b3_ref[...])
    o_ref[...] = jnp.tanh(mu).astype(o_ref.dtype)


def inverse_dynamics_head(latent, next_latent, params, *,
                          block_b=2048, compute_dtype=jnp.float32):
    """latent, next_latent: (B, L).  params in (in, out) layout:
    w1 (2L,H), b1 (1,H), w2 (H,H), b2 (1,H), w3 (H,O), b3 (1,O)."""
    B, L = latent.shape
    H = params["w1"].shape[1]
    O = params["w3"].shape[1]

    cd = jnp.dtype(compute_dtype)
    itm = cd.itemsize
    lat = latent.astype(cd)
    nxt = next_latent.astype(cd)
    w1 = params["w1"].astype(cd)
    w2 = params["w2"].astype(cd)
    w3 = params["w3"].astype(cd)
    # Biases stay f32: added to the f32 MXU accumulators.
    b1 = params["b1"].astype(jnp.float32)
    b2 = params["b2"].astype(jnp.float32)
    b3 = params["b3"].astype(jnp.float32)

    # --- batch tiling --------------------------------------------------------
    sub = {4: 8, 2: 16, 1: 32}.get(itm, 8)   # sublane granularity per dtype
    Bp = B
    if B < sub:  # degenerate tiny batch: pad up to one sublane tile
        lat = jnp.pad(lat, ((0, sub - B), (0, 0)))
        nxt = jnp.pad(nxt, ((0, sub - B), (0, 0)))
        Bp = sub

    # Large tile (multiple of the sublane granule) to amortize grid-step cost.
    TB = max(sub, min(block_b, (Bp // sub) * sub))
    # Keep >= 4 grid steps when the batch allows, so the "parallel" axis can
    # shard across v7x's two TensorCores.
    if Bp >= 4 * sub:
        TB = min(TB, max(sub, _round_up(pl.cdiv(Bp, 4), sub)))
    grid = (pl.cdiv(Bp, TB),)   # ragged last block handled by Pallas masking

    act_spec = lambda n: pl.BlockSpec((TB, n), lambda i: (i, 0))      # streamed
    res_spec = lambda r, c: pl.BlockSpec((r, c), lambda i: (0, 0))    # VMEM-resident

    # --- advisory cost + explicit VMEM budget --------------------------------
    flops = 2 * Bp * (2 * L * H + H * H + H * O)
    bytes_accessed = (2 * Bp * L * itm + Bp * O * 4                   # activations
                      + (2 * L * H + H * H + H * O) * itm             # weights
                      + (2 * H + O) * 4)                              # biases
    lane = 128
    vmem_est = (2 * 2 * TB * L * itm                                  # lat/nxt, 2 bufs
                + 2 * TB * O * 4                                      # output, 2 bufs
                + 2 * ((2 * L * H + H * H + H * O) * itm
                       + (2 * H + O) * 4)                             # resident weights
                + 4 * TB * lane * 4)                                  # x/h1/h2/mu temps
    vmem_limit = int(min(max(4 * vmem_est, 32 << 20), 48 << 20))

    out = pl.pallas_call(
        _idh_kernel,
        out_shape=jax.ShapeDtypeStruct((Bp, O), jnp.float32),
        grid=grid,
        in_specs=[
            act_spec(L), act_spec(L),
            res_spec(2 * L, H), res_spec(1, H),
            res_spec(H, H), res_spec(1, H),
            res_spec(H, O), res_spec(1, O),
        ],
        out_specs=pl.BlockSpec((TB, O), lambda i: (i, 0)),
        compiler_params=pltpu.CompilerParams(
            dimension_semantics=("parallel",),
            vmem_limit_bytes=vmem_limit),
        cost_estimate=pl.CostEstimate(
            flops=flops, transcendentals=Bp * O,
            bytes_accessed=int(bytes_accessed)),
    )(lat, nxt, w1, b1, w2, b2, w3, b3)

    return out if Bp == B else out[:B]


def _make_params(key, input_dim, hidden_dim, output_dim):
    """Deterministic synthetic init (stand-in for weight_init); (in, out) layout."""
    ks = jax.random.split(key, 6)
    s1 = 1.0 / jnp.sqrt(input_dim)
    s2 = 1.0 / jnp.sqrt(hidden_dim)
    return {
        "w1": jax.random.uniform(ks[0], (input_dim, hidden_dim), jnp.float32, -s1, s1),
        "b1": jax.random.uniform(ks[1], (1, hidden_dim), jnp.float32, -s1, s1),
        "w2": jax.random.uniform(ks[2], (hidden_dim, hidden_dim), jnp.float32, -s2, s2),
        "b2": jax.random.uniform(ks[3], (1, hidden_dim), jnp.float32, -s2, s2),
        "w3": jax.random.uniform(ks[4], (hidden_dim, output_dim), jnp.float32, -s2, s2),
        "b3": jax.random.uniform(ks[5], (1, output_dim), jnp.float32, -s2, s2),
    }


def _reference(latent, next_latent, p):
    x = jnp.concatenate([latent, next_latent], axis=-1)
    h = jnp.maximum(x @ p["w1"] + p["b1"], 0.0)
    h = jnp.maximum(h @ p["w2"] + p["b2"], 0.0)
    return jnp.tanh(h @ p["w3"] + p["b3"])


if __name__ == "__main__":
    key = jax.random.PRNGKey(0)
    k_par, k1, k2, k3, k4, k5, k6 = jax.random.split(key, 7)

    L = 16            # per-latent feature dim
    input_dim = 2 * L
    hidden_dim = 32
    output_dim = 8
    params = _make_params(k_par, input_dim, hidden_dim, output_dim)

    # Case 1: single full tile (B multiple of 8), f32 path, tight tolerance.
    B1 = 8
    lat1 = jax.random.normal(k1, (B1, L), jnp.float32)
    nxt1 = jax.random.normal(k2, (B1, L), jnp.float32)
    out1 = jax.block_until_ready(inverse_dynamics_head(lat1, nxt1, params))
    ref1 = _reference(lat1, nxt1, params)
    assert out1.shape == (B1, output_dim)
    assert jnp.allclose(out1, ref1, atol=1e-5, rtol=1e-5), "mismatch (B=8, f32)"

    # Case 2: ragged batch -> ragged last grid block, no wrapper pad/slice.
    B2 = 20
    lat2 = jax.random.normal(k3, (B2, L), jnp.float32)
    nxt2 = jax.random.normal(k4, (B2, L), jnp.float32)
    out2 = jax.block_until_ready(inverse_dynamics_head(lat2, nxt2, params))
    ref2 = _reference(lat2, nxt2, params)
    assert out2.shape == (B2, output_dim)
    assert jnp.allclose(out2, ref2, atol=1e-5, rtol=1e-5), "mismatch (B=20, f32)"

    # Case 3: multi-step grid (>= 4 steps for v7x 2-TC sharding) + ragged tail.
    B3 = 200
    lat3 = jax.random.normal(k5, (B3, L), jnp.float32)
    nxt3 = jax.random.normal(k6, (B3, L), jnp.float32)
    out3 = jax.block_until_ready(inverse_dynamics_head(lat3, nxt3, params))
    ref3 = _reference(lat3, nxt3, params)
    assert out3.shape == (B3, output_dim)
    assert jnp.allclose(out3, ref3, atol=1e-5, rtol=1e-5), "mismatch (B=200, f32)"

    # Case 4: bf16 matmul inputs / f32 accumulation (v6e/v7x fast path).
    out4 = jax.block_until_ready(
        inverse_dynamics_head(lat3, nxt3, params, compute_dtype=jnp.bfloat16))
    assert out4.shape == (B3, output_dim)
    assert jnp.allclose(out4, ref3, atol=3e-2, rtol=3e-2), "mismatch (B=200, bf16)"

    print("KERNEL_OK")
</pallas_src>

<mosaic_0001>
module attributes {stable_mosaic.version = 11 : i64} {
  func.func @_idh_kernel(%arg0: i32, %arg1: memref<8x16xf32, #tpu.memory_space<vmem>>, %arg2: memref<8x16xf32, #tpu.memory_space<vmem>>, %arg3: memref<32x32xf32, #tpu.memory_space<vmem>>, %arg4: memref<1x32xf32, #tpu.memory_space<vmem>>, %arg5: memref<32x32xf32, #tpu.memory_space<vmem>>, %arg6: memref<1x32xf32, #tpu.memory_space<vmem>>, %arg7: memref<32x8xf32, #tpu.memory_space<vmem>>, %arg8: memref<1x8xf32, #tpu.memory_space<vmem>>, %arg9: memref<8x8xf32, #tpu.memory_space<vmem>>) attributes {dimension_semantics = [#tpu.dimension_semantics<parallel>], iteration_bounds = array<i64: 1>, scalar_prefetch = 0 : i64, scratch_operands = 0 : i64, tpu.core_type = #tpu.core_type<tc>, window_params = [{transform_indices = @transform_0, window_bounds = array<i64: 8, 16>}, {transform_indices = @transform_1, window_bounds = array<i64: 8, 16>}, {pipeline_mode = #tpu.pipeline_mode<synchronous>, transform_indices = @transform_2, window_bounds = array<i64: 32, 32>}, {pipeline_mode = #tpu.pipeline_mode<synchronous>, transform_indices = @transform_3, window_bounds = array<i64: 1, 32>}, {pipeline_mode = #tpu.pipeline_mode<synchronous>, transform_indices = @transform_4, window_bounds = array<i64: 32, 32>}, {pipeline_mode = #tpu.pipeline_mode<synchronous>, transform_indices = @transform_5, window_bounds = array<i64: 1, 32>}, {pipeline_mode = #tpu.pipeline_mode<synchronous>, transform_indices = @transform_6, window_bounds = array<i64: 32, 8>}, {pipeline_mode = #tpu.pipeline_mode<synchronous>, transform_indices = @transform_7, window_bounds = array<i64: 1, 8>}, {transform_indices = @transform_8, window_bounds = array<i64: 8, 8>}]} {
    %c0 = arith.constant 0 : index
    %c0_0 = arith.constant 0 : index
    %0 = vector.load %arg1[%c0, %c0_0] : memref<8x16xf32, #tpu.memory_space<vmem>>, vector<8x16xf32>
    %c0_1 = arith.constant 0 : index
    %c0_2 = arith.constant 0 : index
    %1 = vector.load %arg2[%c0_1, %c0_2] : memref<8x16xf32, #tpu.memory_space<vmem>>, vector<8x16xf32>
    %2 = tpu.concatenate %0, %1 in 1 : vector<8x16xf32>, vector<8x16xf32> -> vector<8x32xf32>
    %c0_3 = arith.constant 0 : index
    %c0_4 = arith.constant 0 : index
    %3 = vector.load %arg3[%c0_3, %c0_4] : memref<32x32xf32, #tpu.memory_space<vmem>>, vector<32x32xf32>
    %cst = arith.constant dense<0.000000e+00> : vector<8x32xf32>
    %4 = tpu.matmul %2, %3, %cst {dimension_numbers = #tpu.dot_dimension_numbers<[1], [0], [0], [1], [0, 0, 1, 1], [], []>} : vector<8x32xf32>, vector<32x32xf32>, vector<8x32xf32> -> vector<8x32xf32>
    %c0_5 = arith.constant 0 : index
    %c0_6 = arith.constant 0 : index
    %5 = vector.load %arg4[%c0_5, %c0_6] : memref<1x32xf32, #tpu.memory_space<vmem>>, vector<1x32xf32>
    %6 = vector.broadcast %5 : vector<1x32xf32> to vector<8x32xf32>
    %7 = arith.addf %4, %6 : vector<8x32xf32>
    %cst_7 = arith.constant 0.000000e+00 : f32
    %8 = vector.broadcast %cst_7 : f32 to vector<8x32xf32>
    %9 = arith.maximumf %7, %8 : vector<8x32xf32>
    %c0_8 = arith.constant 0 : index
    %c0_9 = arith.constant 0 : index
    %10 = vector.load %arg5[%c0_8, %c0_9] : memref<32x32xf32, #tpu.memory_space<vmem>>, vector<32x32xf32>
    %cst_10 = arith.constant dense<0.000000e+00> : vector<8x32xf32>
    %11 = tpu.matmul %9, %10, %cst_10 {dimension_numbers = #tpu.dot_dimension_numbers<[1], [0], [0], [1], [0, 0, 1, 1], [], []>} : vector<8x32xf32>, vector<32x32xf32>, vector<8x32xf32> -> vector<8x32xf32>
    %c0_11 = arith.constant 0 : index
    %c0_12 = arith.constant 0 : index
    %12 = vector.load %arg6[%c0_11, %c0_12] : memref<1x32xf32, #tpu.memory_space<vmem>>, vector<1x32xf32>
    %13 = vector.broadcast %12 : vector<1x32xf32> to vector<8x32xf32>
    %14 = arith.addf %11, %13 : vector<8x32xf32>
    %cst_13 = arith.constant 0.000000e+00 : f32
    %15 = vector.broadcast %cst_13 : f32 to vector<8x32xf32>
    %16 = arith.maximumf %14, %15 : vector<8x32xf32>
    %c0_14 = arith.constant 0 : index
    %c0_15 = arith.constant 0 : index
    %17 = vector.load %arg7[%c0_14, %c0_15] : memref<32x8xf32, #tpu.memory_space<vmem>>, vector<32x8xf32>
    %cst_16 = arith.constant dense<0.000000e+00> : vector<8x8xf32>
    %18 = tpu.matmul %16, %17, %cst_16 {dimension_numbers = #tpu.dot_dimension_numbers<[1], [0], [0], [1], [0, 0, 1, 1], [], []>} : vector<8x32xf32>, vector<32x8xf32>, vector<8x8xf32> -> vector<8x8xf32>
    %c0_17 = arith.constant 0 : index
    %c0_18 = arith.constant 0 : index
    %19 = vector.load %arg8[%c0_17, %c0_18] : memref<1x8xf32, #tpu.memory_space<vmem>>, vector<1x8xf32>
    %20 = vector.broadcast %19 : vector<1x8xf32> to vector<8x8xf32>
    %21 = arith.addf %18, %20 : vector<8x8xf32>
    %22 = math.tanh %21 : vector<8x8xf32>
    %c0_19 = arith.constant 0 : index
    %c0_20 = arith.constant 0 : index
    %23 = vector.load %arg9[%c0_19, %c0_20] : memref<8x8xf32, #tpu.memory_space<vmem>>, vector<8x8xf32>
    tpu.vector_store %arg9[%c0_19, %c0_20], %22 {strides = array<i32>} : memref<8x8xf32, #tpu.memory_space<vmem>>, vector<8x8xf32>,
    return
  }
  func.func @transform_0(%arg0: i32) -> (i32, i32) {
    %c0_i32 = arith.constant 0 : i32
    %c0_i32_0 = arith.constant 0 : i32
    return %arg0, %c0_i32 : i32, i32
  }
  func.func @transform_1(%arg0: i32) -> (i32, i32) {
    %c0_i32 = arith.constant 0 : i32
    %c0_i32_0 = arith.constant 0 : i32
    return %arg0, %c0_i32 : i32, i32
  }
  func.func @transform_2(%arg0: i32) -> (i32, i32) {
    %c0_i32 = arith.constant 0 : i32
    %c0_i32_0 = arith.constant 0 : i32
    %c0_i32_1 = arith.constant 0 : i32
    return %c0_i32, %c0_i32_0 : i32, i32
  }
  func.func @transform_3(%arg0: i32) -> (i32, i32) {
    %c0_i32 = arith.constant 0 : i32
    %c0_i32_0 = arith.constant 0 : i32
    %c0_i32_1 = arith.constant 0 : i32
    return %c0_i32, %c0_i32_0 : i32, i32
  }
  func.func @transform_4(%arg0: i32) -> (i32, i32) {
    %c0_i32 = arith.constant 0 : i32
    %c0_i32_0 = arith.constant 0 : i32
    %c0_i32_1 = arith.constant 0 : i32
    return %c0_i32, %c0_i32_0 : i32, i32
  }
  func.func @transform_5(%arg0: i32) -> (i32, i32) {
    %c0_i32 = arith.constant 0 : i32
    %c0_i32_0 = arith.constant 0 : i32
    %c0_i32_1 = arith.constant 0 : i32
    return %c0_i32, %c0_i32_0 : i32, i32
  }
  func.func @transform_6(%arg0: i32) -> (i32, i32) {
    %c0_i32 = arith.constant 0 : i32
    %c0_i32_0 = arith.constant 0 : i32
    %c0_i32_1 = arith.constant 0 : i32
    return %c0_i32, %c0_i32_0 : i32, i32
  }
  func.func @transform_7(%arg0: i32) -> (i32, i32) {
    %c0_i32 = arith.constant 0 : i32
    %c0_i32_0 = arith.constant 0 : i32
    %c0_i32_1 = arith.constant 0 : i32
    return %c0_i32, %c0_i32_0 : i32, i32
  }
  func.func @transform_8(%arg0: i32) -> (i32, i32) {
    %c0_i32 = arith.constant 0 : i32
    %c0_i32_0 = arith.constant 0 : i32
    return %arg0, %c0_i32 : i32, i32
  }
}

</mosaic_0001>

<llo_original>
// kernel: tpu_custom_call.1
$region0: #{tpu_custom_call.1}
  #allocation0 [shape = 'u32[]', space=smem, size = 0x4, offset = 0x4, fixed_abs, tag = 'smem constant byte address 0x4 - core index']
  #allocation1 [shape = 'u32[72,128]{1,0:T(1,128)}', space=vmem, size = 0x9000, scoped, tag = 'internal scratch']
  %s0 = inlined_call_operand.vmem [shape: f32[8,16], index: 0, kind: input, shape index: {}]
  %s1 = inlined_call_operand.hbm [shape: f32[8,16], index: 1, kind: input, shape index: {}]
  %s2 = inlined_call_operand.vmem [shape: f32[32,32], index: 2, kind: input, shape index: {}]
  %s3 = inlined_call_operand.vmem [shape: f32[1,32], index: 3, kind: input, shape index: {}]
  %s4 = inlined_call_operand.hbm [shape: f32[32,32], index: 4, kind: input, shape index: {}]
  %s5 = inlined_call_operand.vmem [shape: f32[1,32], index: 5, kind: input, shape index: {}]
  %s6 = inlined_call_operand.vmem [shape: f32[32,8], index: 6, kind: input, shape index: {}]
  %s7 = inlined_call_operand.vmem [shape: f32[1,8], index: 7, kind: input, shape index: {}]
  %s8 = inlined_call_operand.hbm [shape: f32[8,8], index: 8, kind: output, shape index: {}]
  %s9 = sld [smem:[#allocation0]]
  $region50: #{tpu_custom_call.1} parent=0
    _
  %s11 = ssub.s32 1, %s9
  %s12 = scalar_select 0, %s11, %s9
  $region1: #{tpu_custom_call.1} parent=0
    #allocation2 [shape = 'u8[4096]{0}', space=vmem, size = 0x1000, scoped, tag = 'input window, operand 1, single buffered']
    #allocation3 [shape = 's32[1]{0}', space=sflag, size = 0x4, scoped, tag = 'scoped memory for tpu_custom_call.1']
    #allocation4 [shape = 's32[1]{0}', space=sflag, size = 0x4, scoped, tag = 'scoped memory for tpu_custom_call.1']
    #allocation5 [shape = 'u8[16384]{0}', space=vmem, size = 0x4000, scoped, tag = 'input window, operand 4, single buffered']
    #allocation6 [shape = 's32[1]{0}', space=sflag, size = 0x4, scoped, tag = 'scoped memory for tpu_custom_call.1']
    #allocation7 [shape = 'u8[4096]{0}', space=vmem, size = 0x1000, scoped, tag = 'output window, operand 0, single buffered']
    %13 = vsyncpa [#allocation3], 0
    %14 = vsyncpa [#allocation6], 0
    %15 = vsyncpa [#allocation4], 0
    // Predicated region
    $region2: #{tpu_custom_call.1} parent=1 // pred_check
      _
    $region3: #{tpu_custom_call.1} parent=1 // pred_check_branch
      %17 = sbr.rel (0) target = $region5
    $region4: #{tpu_custom_call.1} parent=1 // pred_region
      _
    $region5: #{tpu_custom_call.1} parent=1 // pred_fallthru
      _
    // Predicated region
    $region6: #{tpu_custom_call.1} parent=1 // pred_check
      _
    $region7: #{tpu_custom_call.1} parent=1 // pred_check_branch
      %19 = sbr.rel (0) target = $region9
    $region8: #{tpu_custom_call.1} parent=1 // pred_region
      %21 = vsyncadd [#allocation3], 0
      %s23 = sshll.u32 %s1, 4
      %s24 = int_to_ptr.hbm [resolvable:$true] %s23
      %s25 = sshll.u32 [#allocation2], 4
      %s26 = int_to_ptr.vmem [resolvable:$true] %s25
      %28 = dma.hbm_to_vmem [thread:$0]  %s24, 128, %s26, [#allocation3]
    $region9: #{tpu_custom_call.1} parent=1 // pred_fallthru
      _
    // Predicated region
    $region10: #{tpu_custom_call.1} parent=1 // pred_check
      _
    $region11: #{tpu_custom_call.1} parent=1 // pred_check_branch
      %30 = sbr.rel (0) target = $region13
    $region12: #{tpu_custom_call.1} parent=1 // pred_region
      _
    $region13: #{tpu_custom_call.1} parent=1 // pred_fallthru
      _
    // Predicated region
    $region14: #{tpu_custom_call.1} parent=1 // pred_check
      _
    $region15: #{tpu_custom_call.1} parent=1 // pred_check_branch
      %32 = sbr.rel (0) target = $region17
    $region16: #{tpu_custom_call.1} parent=1 // pred_region
      _
    $region17: #{tpu_custom_call.1} parent=1 // pred_fallthru
      _
    // Predicated region
    $region18: #{tpu_custom_call.1} parent=1 // pred_check
      _
    $region19: #{tpu_custom_call.1} parent=1 // pred_check_branch
      %34 = sbr.rel (0) target = $region21
    $region20: #{tpu_custom_call.1} parent=1 // pred_region
      %36 = vsyncadd [#allocation6], 0
      %s37 = sshll.u32 %s4, 4
      %s38 = int_to_ptr.hbm [resolvable:$true] %s37
      %s39 = sshll.u32 [#allocation5], 4
      %s40 = int_to_ptr.vmem [resolvable:$true] %s39
      %45 = dma.hbm_to_vmem [thread:$0]  %s38, 512, %s40, [#allocation6], 128, 128, 8
    $region21: #{tpu_custom_call.1} parent=1 // pred_fallthru
      _
    // Predicated region
    $region22: #{tpu_custom_call.1} parent=1 // pred_check
      _
    $region23: #{tpu_custom_call.1} parent=1 // pred_check_branch
      %47 = sbr.rel (0) target = $region25
    $region24: #{tpu_custom_call.1} parent=1 // pred_region
      _
    $region25: #{tpu_custom_call.1} parent=1 // pred_fallthru
      _
    // Predicated region
    $region26: #{tpu_custom_call.1} parent=1 // pred_check
      _
    $region27: #{tpu_custom_call.1} parent=1 // pred_check_branch
      %49 = sbr.rel (0) target = $region29
    $region28: #{tpu_custom_call.1} parent=1 // pred_region
      _
    $region29: #{tpu_custom_call.1} parent=1 // pred_fallthru
      _
    // Predicated region
    $region30: #{tpu_custom_call.1} parent=1 // pred_check
      _
    $region31: #{tpu_custom_call.1} parent=1 // pred_check_branch
      %51 = sbr.rel (0) target = $region33
    $region32: #{tpu_custom_call.1} parent=1 // pred_region
      _
    $region33: #{tpu_custom_call.1} parent=1 // pred_fallthru
      _
    // Predicated region
    $region34: #{tpu_custom_call.1} parent=1 // pred_check
      _
    $region35: #{tpu_custom_call.1} parent=1 // pred_check_branch
      %53 = sbr.rel (0) target = $region37
    $region36: #{tpu_custom_call.1} parent=1 // pred_region
      %55 = dma.done [#allocation3], 128
    $region37: #{tpu_custom_call.1} parent=1 // pred_fallthru
      _
    // Predicated region
    $region38: #{tpu_custom_call.1} parent=1 // pred_check
      _
    $region39: #{tpu_custom_call.1} parent=1 // pred_check_branch
      %57 = sbr.rel (0) target = $region41
    $region40: #{tpu_custom_call.1} parent=1 // pred_region
      %59 = dma.done [#allocation6], 512
    $region41: #{tpu_custom_call.1} parent=1 // pred_fallthru
      _
    %v60 = vld [vmem:[%s0] sm:$0xff]
    %v61 = vld [vmem:[#allocation2] sm:$0xff]
    %63 = vrot.lane.b32.xlu0 %v61, 16
    %v64 = vpop.permute.xlu0 %63
    %vm66 = vcmask 130048
    %v67 = vsel %vm66, %v60, %v64
    %v68 = vld [vmem:[%s2] sm:$0xff]
    %v69 = vld [vmem:[%s2 + $0x8] sm:$0xff]
    %v70 = vld [vmem:[%s2 + $0x10] sm:$0xff]
    %v71 = vld [vmem:[%s2 + $0x18] sm:$0xff]
    %v72 = vld [vmem:[%s3] sm:$0x1]
    %v74 = vperm.slane %v72, 0
    %vm76 = vcmask 261120
    %v78 = vsel %vm76, %v67, 0
    %80 = vmatpush.msra.mxu0 0.0
    %81 = vmatpush.msra.mxu0 0.0
    %82 = vmatpush.msra.mxu0 0.0
    %83 = vmatpush.msra.mxu0 0.0
    %84 = vmatpush.msra.mxu0 0.0
    %85 = vmatpush.msra.mxu0 0.0
    %86 = vmatpush.msra.mxu0 0.0
    %87 = vmatpush.msra.mxu0 0.0
    %88 = vmatpush.msra.mxu0 0.0
    %89 = vmatpush.msra.mxu0 0.0
    %90 = vmatpush.msra.mxu0 0.0
    %91 = vmatpush.msra.mxu0 0.0
    %92 = vmatpush.msra.mxu0 %v71
    %93 = vmatpush.msra.mxu0 %v70
    %94 = vmatpush.msra.mxu0 %v69
    %95 = vmatpush.msra.mxu0 %v68
    %96 = vmatmul.f32.gmra.mxu0 %v78
    %v97 = vpop.f32.mrf.mxu0
    %v98 = vadd.f32 %v74, %v97
    %99 = vdwg.mxu0
    %v100 = vmax.f32 %v98, 0.0
    %v101 = vld [vmem:[#allocation5] sm:$0xff]
    %v102 = vld [vmem:[#allocation5 + $0x8] sm:$0xff]
    %v103 = vld [vmem:[#allocation5 + $0x10] sm:$0xff]
    %v104 = vld [vmem:[#allocation5 + $0x18] sm:$0xff]
    %v105 = vld [vmem:[%s5] sm:$0x1]
    %v107 = vperm.slane %v105, 0
    %v110 = vsel %vm76, %v100, 0
    %112 = vmatpush.msra.mxu0 0.0
    %113 = vmatpush.msra.mxu0 0.0
    %114 = vmatpush.msra.mxu0 0.0
    %115 = vmatpush.msra.mxu0 0.0
    %116 = vmatpush.msra.mxu0 0.0
    %117 = vmatpush.msra.mxu0 0.0
    %118 = vmatpush.msra.mxu0 0.0
    %119 = vmatpush.msra.mxu0 0.0
    %120 = vmatpush.msra.mxu0 0.0
    %121 = vmatpush.msra.mxu0 0.0
    %122 = vmatpush.msra.mxu0 0.0
    %123 = vmatpush.msra.mxu0 0.0
    %124 = vmatpush.msra.mxu0 %v104
    %125 = vmatpush.msra.mxu0 %v103
    %126 = vmatpush.msra.mxu0 %v102
    %127 = vmatpush.msra.mxu0 %v101
    %128 = vmatmul.f32.gmra.mxu0 %v110
    %v129 = vpop.f32.mrf.mxu0
    %v130 = vadd.f32 %v107, %v129
    %131 = vdwg.mxu0
    %v132 = vmax.f32 %v130, 0.0
    %v133 = vld [vmem:[%s6] sm:$0xff]
    %v134 = vld [vmem:[%s6 + $0x8] sm:$0xff]
    %v135 = vld [vmem:[%s6 + $0x10] sm:$0xff]
    %v136 = vld [vmem:[%s6 + $0x18] sm:$0xff]
    %v137 = vld [vmem:[%s7] sm:$0x1]
    %v139 = vperm.slane %v137, 0
    %v142 = vsel %vm76, %v132, 0
    %144 = vmatpush.msra.mxu0 0.0
    %145 = vmatpush.msra.mxu0 0.0
    %146 = vmatpush.msra.mxu0 0.0
    %147 = vmatpush.msra.mxu0 0.0
    %148 = vmatpush.msra.mxu0 0.0
    %149 = vmatpush.msra.mxu0 0.0
    %150 = vmatpush.msra.mxu0 0.0
    %151 = vmatpush.msra.mxu0 0.0
    %152 = vmatpush.msra.mxu0 0.0
    %153 = vmatpush.msra.mxu0 0.0
    %154 = vmatpush.msra.mxu0 0.0
    %155 = vmatpush.msra.mxu0 0.0
    %156 = vmatpush.msra.mxu0 %v136
    %157 = vmatpush.msra.mxu0 %v135
    %158 = vmatpush.msra.mxu0 %v134
    %159 = vmatpush.msra.mxu0 %v133
    %160 = vmatmul.f32.gmra.mxu0 %v142
    %v161 = vpop.f32.mrf.mxu0
    %v162 = vadd.f32 %v139, %v161
    %163 = vdwg.mxu0
    %v164 = vtanh.pop %v162
    %vm165 = vcmask 64512
    %166 = vst.msk [vmem:[#allocation7] sm:$0xff] %vm165, %v164
    // Predicated region
    $region42: #{tpu_custom_call.1} parent=1 // pred_check
      _
    $region43: #{tpu_custom_call.1} parent=1 // pred_check_branch
      %168 = sbr.rel (0) target = $region45
    $region44: #{tpu_custom_call.1} parent=1 // pred_region
      %170 = vsyncadd [#allocation4], 0
      %s172 = sshll.u32 [#allocation7], 4
      %s173 = int_to_ptr.vmem [resolvable:$true] %s172
      %s174 = sshll.u32 %s8, 4
      %s175 = int_to_ptr.hbm [resolvable:$true] %s174
      %177 = dma.vmem_to_hbm [thread:$0]  %s173, 128, %s175, [#allocation4]
    $region45: #{tpu_custom_call.1} parent=1 // pred_fallthru
      _
    // Predicated region
    $region46: #{tpu_custom_call.1} parent=1 // pred_check
      _
    $region47: #{tpu_custom_call.1} parent=1 // pred_check_branch
      %179 = sbr.rel (0) target = $region49
    $region48: #{tpu_custom_call.1} parent=1 // pred_region
      %181 = dma.done [#allocation4], 128
    $region49: #{tpu_custom_call.1} parent=1 // pred_fallthru
      _
    %182 = vsyncpa [#allocation3], 1
    %183 = vsyncpa [#allocation6], 1
    %184 = vsyncpa [#allocation4], 1

</llo_original>
